<compile_context>
chip_gen: v6e
topology: v6e:2x2x1
jax: 0.10.0
libtpu: 0.0.40
codegen_flags: <defaults>
</compile_context>

<pallas_src>
import math
import jax
import jax.numpy as jnp
from jax import lax
from jax.experimental import pallas as pl
from jax.experimental.pallas import tpu as pltpu

# ---- module hyper-parameters (small, consistent with __init__) ----
STATE_DIM = 8
N_AGENT = 2
ACTION_DIM = 4
HIDDEN = 32                                   # hidden_sizes[0]; attend_heads=1 -> attend_dim=HIDDEN
BATCH = 8                                     # second axis of inps (must be >= 2)
IDIM = STATE_DIM * N_AGENT + ACTION_DIM * N_AGENT + N_AGENT   # 26
SDIM = STATE_DIM * N_AGENT                                    # 16
BN_EPS = 1e-5
LEAKY_SLOPE = 0.01

LANES = 128
assert 4 * HIDDEN <= LANES                    # [keys|sels|vals|pad] fits one lane group

# Row offsets inside the packed (SLAB_ROWS, 128) parameter slab (8-row aligned blocks).
OFF_W1 = 0                      # (IDIM, 128): cols 0:H  = folded w_enc, cols H:2H = folded w_s
OFF_B1 = 32                     # (1, 128)   : cols 0:H  = b_enc', cols H:2H = b_s'
OFF_W2 = 40                     # (128, 128) : block [[w_k,0,w_v,0],[0,w_sel,0,0],[0,0,0,0]]
OFF_B2 = 168                    # (1, 128)   : cols 2H:3H = b_v
OFF_W3 = 176                    # (2H, 128)  : cols 0:H = w_c1 (rows: s-part then other-part)
OFF_B3 = 240                    # (1, 128)   : cols 0:H = b_c1
OFF_W4 = 248                    # (H, 128)   : cols 0:A = w_c2
OFF_B4 = 280                    # (1, 128)   : cols 0:A = b_c2
SLAB_ROWS = 288                 # 144 KiB f32 — trivial for VMEM on v5e/v6e/v7x


def _leaky(x):
    return jnp.where(x >= 0, x, LEAKY_SLOPE * x)


def attention_critic_kernel(x0_ref, act_ref, p_ref, q_ref):
    H = HIDDEN
    x0 = x0_ref[...]                                           # (BATCH, IDIM) == inps[0]

    # ---- fused encoder: one MXU push gives [sa_enc | s_enc | 0] (BN already folded) ----
    W1 = p_ref[OFF_W1:OFF_W1 + IDIM, :]                        # (IDIM, 128)
    b1 = p_ref[OFF_B1:OFF_B1 + 1, :]                           # (1, 128)
    enc = _leaky(jnp.dot(x0, W1, preferred_element_type=jnp.float32) + b1)   # (BATCH, 128)

    # ---- fused key / selector / value projections: one MXU push ----
    W2 = p_ref[OFF_W2:OFF_W2 + LANES, :]                       # (128, 128)
    b2 = p_ref[OFF_B2:OFF_B2 + 1, :]                           # (1, 128)
    proj = jnp.dot(enc, W2, preferred_element_type=jnp.float32) + b2   # [keys|sels|vals_pre|0]

    key1   = proj[1:2, 0:H]                                    # keys[1]       (1, H)
    sel0   = proj[0:1, H:2 * H]                                # sels[0]       (1, H)
    val1   = _leaky(proj[1:2, 2 * H:3 * H])                    # vals[1]       (1, H)
    s_enc0 = enc[0:1, H:2 * H]                                 # s_enc[0]      (1, H)

    # ---- attention for agent 0: softmax over the attend_dim axis ----
    logits = sel0 * key1 * (1.0 / math.sqrt(H))
    m = jnp.max(logits, axis=1, keepdims=True)
    e = jnp.exp(logits - m)
    w = e * pl.reciprocal(jnp.sum(e, axis=1, keepdims=True), approx=True)
    other = val1 * w                                           # (1, H)

    # ---- critic MLP on concat(s_enc[0], other): single MXU push per layer ----
    cin = jnp.concatenate([s_enc0, other], axis=1)             # (1, 2H)
    W3 = p_ref[OFF_W3:OFF_W3 + 2 * H, :]                       # (2H, 128)
    b3 = p_ref[OFF_B3:OFF_B3 + 1, :]
    h = _leaky(jnp.dot(cin, W3, preferred_element_type=jnp.float32) + b3)    # (1, 128), cols 0:H valid

    W4 = p_ref[OFF_W4:OFF_W4 + H, :]                           # (H, 128)
    b4 = p_ref[OFF_B4:OFF_B4 + 1, :]
    all_q = jnp.dot(h[:, 0:H], W4, preferred_element_type=jnp.float32) + b4  # (1, 128), cols 0:A valid

    # ---- int_acs = argmax over agents of inps[:, 0, SDIM:SDIM+A]; gather on VPU (no MXU) ----
    act = act_ref[...]                                         # (N_AGENT, ACTION_DIM)
    row_iota = lax.broadcasted_iota(jnp.int32, act.shape, 0)
    mx = jnp.max(act, axis=0, keepdims=True)
    idx = jnp.min(jnp.where(act == mx, row_iota, act.shape[0]),
                  axis=0, keepdims=True)                       # (1, A), first-occurrence argmax

    q = jnp.zeros((1, ACTION_DIM), jnp.float32)
    for d in range(ACTION_DIM):                                # static unroll: select + add on VPU
        q = q + jnp.where(idx == d, all_q[0:1, d:d + 1], 0.0)

    # lane-dense (8,128) output; wrapper slices [:1, :ACTION_DIM]
    q_ref[...] = jnp.zeros_like(q_ref)
    q_ref[0:1, 0:ACTION_DIM] = q


def make_params(key):
    ks = jax.random.split(key, 8)

    def lin(k, fan_in, fan_out):
        bound = 1.0 / math.sqrt(fan_in)
        kw, kb = jax.random.split(k)
        w = jax.random.uniform(kw, (fan_in, fan_out), jnp.float32, -bound, bound)
        b = jax.random.uniform(kb, (1, fan_out), jnp.float32, -bound, bound)
        return w, b

    p = {}
    # BatchNorm1d running stats at init (affine=False)
    p['rm_e'] = jnp.zeros((1, IDIM), jnp.float32)
    p['rv_e'] = jnp.ones((1, IDIM), jnp.float32)
    p['rm_s'] = jnp.zeros((1, SDIM), jnp.float32)
    p['rv_s'] = jnp.ones((1, SDIM), jnp.float32)
    p['w_enc'], p['b_enc'] = lin(ks[0], IDIM, HIDDEN)          # enc_fc1
    p['w_s'], p['b_s'] = lin(ks[1], SDIM, HIDDEN)              # s_enc_fc1
    p['w_k'] = lin(ks[2], HIDDEN, HIDDEN)[0]                   # key extractor (bias=False)
    p['w_sel'] = lin(ks[3], HIDDEN, HIDDEN)[0]                 # selector extractor (bias=False)
    p['w_v'], p['b_v'] = lin(ks[4], HIDDEN, HIDDEN)            # value extractor
    w_c1, p['b_c1'] = lin(ks[5], 2 * HIDDEN, HIDDEN)           # critic_fc1 (input = 2H)
    p['w_c1a'], p['w_c1b'] = w_c1[:HIDDEN], w_c1[HIDDEN:]
    p['w_c2'], p['b_c2'] = lin(ks[6], HIDDEN, ACTION_DIM)      # critic_fc2
    return p


def pack_params(p):
    """Fold eval-mode BN into the encoder layers and pack everything into one slab. Runs once."""
    H, A = HIDDEN, ACTION_DIM

    scale_e = 1.0 / jnp.sqrt(p['rv_e'] + BN_EPS)               # (1, IDIM)
    w_enc_f = p['w_enc'] * scale_e.T                           # (IDIM, H)
    b_enc_f = p['b_enc'] - (p['rm_e'] * scale_e) @ p['w_enc']  # (1, H)
    scale_s = 1.0 / jnp.sqrt(p['rv_s'] + BN_EPS)
    w_s_f = p['w_s'] * scale_s.T                               # (SDIM, H)
    b_s_f = p['b_s'] - (p['rm_s'] * scale_s) @ p['w_s']

    slab = jnp.zeros((SLAB_ROWS, LANES), jnp.float32)
    # W1 / b1: fused encoder
    slab = slab.at[OFF_W1:OFF_W1 + IDIM, 0:H].set(w_enc_f)
    slab = slab.at[OFF_W1:OFF_W1 + SDIM, H:2 * H].set(w_s_f)
    slab = slab.at[OFF_B1, 0:H].set(b_enc_f[0])
    slab = slab.at[OFF_B1, H:2 * H].set(b_s_f[0])
    # W2 / b2: fused key/selector/value projection (input lanes [sa | s | 0])
    slab = slab.at[OFF_W2:OFF_W2 + H, 0:H].set(p['w_k'])
    slab = slab.at[OFF_W2:OFF_W2 + H, 2 * H:3 * H].set(p['w_v'])
    slab = slab.at[OFF_W2 + H:OFF_W2 + 2 * H, H:2 * H].set(p['w_sel'])
    slab = slab.at[OFF_B2, 2 * H:3 * H].set(p['b_v'][0])
    # W3 / b3: critic_fc1 on [s_enc0 | other]
    slab = slab.at[OFF_W3:OFF_W3 + H, 0:H].set(p['w_c1a'])
    slab = slab.at[OFF_W3 + H:OFF_W3 + 2 * H, 0:H].set(p['w_c1b'])
    slab = slab.at[OFF_B3, 0:H].set(p['b_c1'][0])
    # W4 / b4: critic_fc2
    slab = slab.at[OFF_W4:OFF_W4 + H, 0:A].set(p['w_c2'])
    slab = slab.at[OFF_B4, 0:A].set(p['b_c2'][0])
    return slab


@jax.jit
def attention_critic_forward(inps, slab):
    # glue: slicing of inps (plain JAX); all hot-path math is inside the kernel
    x0 = inps[0]                                       # (BATCH, IDIM)
    act = inps[:, 0, SDIM:SDIM + ACTION_DIM]           # actions[:, 0, 0:action_dim]
    out = pl.pallas_call(
        attention_critic_kernel,
        out_shape=jax.ShapeDtypeStruct((8, LANES), jnp.float32),   # lane-dense padded output
        in_specs=[pl.BlockSpec(memory_space=pltpu.MemorySpace.VMEM)] * 3,
        out_specs=pl.BlockSpec(memory_space=pltpu.MemorySpace.VMEM),
    )(x0, act, slab)
    return out[:1, :ACTION_DIM]


def attention_critic_ref(inps, p):
    # pure-JAX reference of the same semantics (raw, unfused params), for a sanity check
    x0 = inps[0]
    xn = (x0 - p['rm_e']) * lax.rsqrt(p['rv_e'] + BN_EPS)
    sa = _leaky(xn @ p['w_enc'] + p['b_enc'])
    sn = (x0[:, :SDIM] - p['rm_s']) * lax.rsqrt(p['rv_s'] + BN_EPS)
    se = _leaky(sn @ p['w_s'] + p['b_s'])
    keys = sa @ p['w_k']
    sels = se @ p['w_sel']
    vals = _leaky(sa @ p['w_v'] + p['b_v'])
    w = jax.nn.softmax((sels[0:1] * keys[1:2]) / math.sqrt(HIDDEN), axis=1)
    other = vals[1:2] * w
    h = _leaky(se[0:1] @ p['w_c1a'] + other @ p['w_c1b'] + p['b_c1'])
    all_q = h @ p['w_c2'] + p['b_c2']
    act = inps[:, 0, SDIM:SDIM + ACTION_DIM]
    idx = jnp.argmax(act, axis=0)
    return all_q[:, idx]


if __name__ == "__main__":
    key = jax.random.PRNGKey(0)
    k_in, k_par = jax.random.split(key)
    inps = jax.random.normal(k_in, (N_AGENT, BATCH, IDIM), dtype=jnp.float32)
    params = make_params(k_par)
    slab = pack_params(params)          # fold BN + pack once at init

    q = attention_critic_forward(inps, slab)
    q = jax.block_until_ready(q)

    q_ref = jax.block_until_ready(attention_critic_ref(inps, params))
    assert q.shape == (1, ACTION_DIM), q.shape
    assert jnp.allclose(q, q_ref, atol=2e-3, rtol=2e-3), (q, q_ref)
    print("KERNEL_OK")
</pallas_src>

<mosaic_0001>
module attributes {stable_mosaic.version = 11 : i64} {
  func.func @attention_critic_kernel(%arg0: memref<8x26xf32, #tpu.memory_space<vmem>>, %arg1: memref<2x4xf32, #tpu.memory_space<vmem>>, %arg2: memref<288x128xf32, #tpu.memory_space<vmem>>, %arg3: memref<8x128xf32, #tpu.memory_space<vmem>>) attributes {dimension_semantics = [], scalar_prefetch = 0 : i64, scratch_operands = 0 : i64, tpu.core_type = #tpu.core_type<tc>} {
    %c0 = arith.constant 0 : index
    %c0_0 = arith.constant 0 : index
    %0 = vector.load %arg0[%c0, %c0_0] : memref<8x26xf32, #tpu.memory_space<vmem>>, vector<8x26xf32>
    %c0_1 = arith.constant 0 : index
    %c0_2 = arith.constant 0 : index
    %1 = vector.load %arg2[%c0_1, %c0_2] : memref<288x128xf32, #tpu.memory_space<vmem>>, vector<26x128xf32>
    %c32 = arith.constant 32 : index
    %c0_3 = arith.constant 0 : index
    %2 = vector.load %arg2[%c32, %c0_3] : memref<288x128xf32, #tpu.memory_space<vmem>>, vector<1x128xf32>
    %cst = arith.constant dense<0.000000e+00> : vector<8x128xf32>
    %3 = tpu.matmul %0, %1, %cst {dimension_numbers = #tpu.dot_dimension_numbers<[1], [0], [0], [1], [0, 0, 1, 1], [], []>} : vector<8x26xf32>, vector<26x128xf32>, vector<8x128xf32> -> vector<8x128xf32>
    %4 = vector.broadcast %2 : vector<1x128xf32> to vector<8x128xf32>
    %5 = arith.addf %3, %4 : vector<8x128xf32>
    %cst_4 = arith.constant 0.000000e+00 : f32
    %6 = vector.broadcast %cst_4 : f32 to vector<8x128xf32>
    %7 = arith.cmpf oge, %5, %6 : vector<8x128xf32>
    %cst_5 = arith.constant 0.00999999977 : f32
    %8 = vector.broadcast %cst_5 : f32 to vector<8x128xf32>
    %9 = arith.mulf %8, %5 : vector<8x128xf32>
    %10 = arith.select %7, %5, %9 : vector<8x128xi1>, vector<8x128xf32>
    %c40 = arith.constant 40 : index
    %c0_6 = arith.constant 0 : index
    %11 = vector.load %arg2[%c40, %c0_6] : memref<288x128xf32, #tpu.memory_space<vmem>>, vector<128x128xf32>
    %c168 = arith.constant 168 : index
    %c0_7 = arith.constant 0 : index
    %12 = vector.load %arg2[%c168, %c0_7] : memref<288x128xf32, #tpu.memory_space<vmem>>, vector<1x128xf32>
    %cst_8 = arith.constant dense<0.000000e+00> : vector<8x128xf32>
    %13 = tpu.matmul %10, %11, %cst_8 {dimension_numbers = #tpu.dot_dimension_numbers<[1], [0], [0], [1], [0, 0, 1, 1], [], []>} : vector<8x128xf32>, vector<128x128xf32>, vector<8x128xf32> -> vector<8x128xf32>
    %14 = vector.broadcast %12 : vector<1x128xf32> to vector<8x128xf32>
    %15 = arith.addf %13, %14 : vector<8x128xf32>
    %16 = vector.extract_strided_slice %15 {offsets = [1, 0], sizes = [1, 32], strides = [1, 1]} : vector<8x128xf32> to vector<1x32xf32>
    %17 = vector.extract_strided_slice %15 {offsets = [0, 32], sizes = [1, 32], strides = [1, 1]} : vector<8x128xf32> to vector<1x32xf32>
    %18 = vector.extract_strided_slice %15 {offsets = [1, 64], sizes = [1, 32], strides = [1, 1]} : vector<8x128xf32> to vector<1x32xf32>
    %cst_9 = arith.constant 0.000000e+00 : f32
    %19 = vector.broadcast %cst_9 : f32 to vector<1x32xf32>
    %20 = arith.cmpf oge, %18, %19 : vector<1x32xf32>
    %cst_10 = arith.constant 0.00999999977 : f32
    %21 = vector.broadcast %cst_10 : f32 to vector<1x32xf32>
    %22 = arith.mulf %21, %18 : vector<1x32xf32>
    %23 = arith.select %20, %18, %22 : vector<1x32xi1>, vector<1x32xf32>
    %24 = vector.extract_strided_slice %10 {offsets = [0, 32], sizes = [1, 32], strides = [1, 1]} : vector<8x128xf32> to vector<1x32xf32>
    %25 = arith.mulf %17, %16 : vector<1x32xf32>
    %cst_11 = arith.constant 0.176776692 : f32
    %26 = vector.broadcast %cst_11 : f32 to vector<1x32xf32>
    %27 = arith.mulf %25, %26 : vector<1x32xf32>
    %cst_12 = arith.constant dense<0xFF800000> : vector<1xf32>
    %28 = vector.multi_reduction <maximumf>, %27, %cst_12 [1] : vector<1x32xf32> to vector<1xf32>
    %29 = vector.shape_cast %28 : vector<1xf32> to vector<1x1xf32>
    %30 = vector.broadcast %29 : vector<1x1xf32> to vector<1x32xf32>
    %31 = arith.subf %27, %30 : vector<1x32xf32>
    %32 = math.exp %31 : vector<1x32xf32>
    %cst_13 = arith.constant dense<0.000000e+00> : vector<1xf32>
    %33 = vector.multi_reduction <add>, %32, %cst_13 [1] : vector<1x32xf32> to vector<1xf32>
    %34 = vector.shape_cast %33 : vector<1xf32> to vector<1x1xf32>
    %35 = tpu.reciprocal %34 {approx = true} : vector<1x1xf32> -> vector<1x1xf32>
    %36 = vector.broadcast %35 : vector<1x1xf32> to vector<1x32xf32>
    %37 = arith.mulf %32, %36 : vector<1x32xf32>
    %38 = arith.mulf %23, %37 : vector<1x32xf32>
    %39 = tpu.concatenate %24, %38 in 1 : vector<1x32xf32>, vector<1x32xf32> -> vector<1x64xf32>
    %c176 = arith.constant 176 : index
    %c0_14 = arith.constant 0 : index
    %40 = vector.load %arg2[%c176, %c0_14] : memref<288x128xf32, #tpu.memory_space<vmem>>, vector<64x128xf32>
    %c240 = arith.constant 240 : index
    %c0_15 = arith.constant 0 : index
    %41 = vector.load %arg2[%c240, %c0_15] : memref<288x128xf32, #tpu.memory_space<vmem>>, vector<1x128xf32>
    %cst_16 = arith.constant dense<0.000000e+00> : vector<1x128xf32>
    %42 = tpu.matmul %39, %40, %cst_16 {dimension_numbers = #tpu.dot_dimension_numbers<[1], [0], [0], [1], [0, 0, 1, 1], [], []>} : vector<1x64xf32>, vector<64x128xf32>, vector<1x128xf32> -> vector<1x128xf32>
    %43 = arith.addf %42, %41 : vector<1x128xf32>
    %cst_17 = arith.constant 0.000000e+00 : f32
    %44 = vector.broadcast %cst_17 : f32 to vector<1x128xf32>
    %45 = arith.cmpf oge, %43, %44 : vector<1x128xf32>
    %cst_18 = arith.constant 0.00999999977 : f32
    %46 = vector.broadcast %cst_18 : f32 to vector<1x128xf32>
    %47 = arith.mulf %46, %43 : vector<1x128xf32>
    %48 = arith.select %45, %43, %47 : vector<1x128xi1>, vector<1x128xf32>
    %c248 = arith.constant 248 : index
    %c0_19 = arith.constant 0 : index
    %49 = vector.load %arg2[%c248, %c0_19] : memref<288x128xf32, #tpu.memory_space<vmem>>, vector<32x128xf32>
    %c280 = arith.constant 280 : index
    %c0_20 = arith.constant 0 : index
    %50 = vector.load %arg2[%c280, %c0_20] : memref<288x128xf32, #tpu.memory_space<vmem>>, vector<1x128xf32>
    %51 = vector.extract_strided_slice %48 {offsets = [0, 0], sizes = [1, 32], strides = [1, 1]} : vector<1x128xf32> to vector<1x32xf32>
    %cst_21 = arith.constant dense<0.000000e+00> : vector<1x128xf32>
    %52 = tpu.matmul %51, %49, %cst_21 {dimension_numbers = #tpu.dot_dimension_numbers<[1], [0], [0], [1], [0, 0, 1, 1], [], []>} : vector<1x32xf32>, vector<32x128xf32>, vector<1x128xf32> -> vector<1x128xf32>
    %53 = arith.addf %52, %50 : vector<1x128xf32>
    %c0_22 = arith.constant 0 : index
    %c0_23 = arith.constant 0 : index
    %54 = vector.load %arg1[%c0_22, %c0_23] : memref<2x4xf32, #tpu.memory_space<vmem>>, vector<2x4xf32>
    %55 = tpu.iota {dimensions = array<i32: 0>} : vector<2x4xi32>
    %cst_24 = arith.constant dense<0xFF800000> : vector<4xf32>
    %56 = vector.multi_reduction <maximumf>, %54, %cst_24 [0] : vector<2x4xf32> to vector<4xf32>
    %57 = vector.shape_cast %56 : vector<4xf32> to vector<1x4xf32>
    %58 = vector.broadcast %57 : vector<1x4xf32> to vector<2x4xf32>
    %59 = arith.cmpf oeq, %54, %58 : vector<2x4xf32>
    %c2_i32 = arith.constant 2 : i32
    %60 = vector.broadcast %c2_i32 : i32 to vector<2x4xi32>
    %61 = arith.select %59, %55, %60 : vector<2x4xi1>, vector<2x4xi32>
    %cst_25 = arith.constant dense<2147483647> : vector<4xi32>
    %62 = vector.multi_reduction <minsi>, %61, %cst_25 [0] : vector<2x4xi32> to vector<4xi32>
    %63 = vector.shape_cast %62 : vector<4xi32> to vector<1x4xi32>
    %cst_26 = arith.constant 0.000000e+00 : f32
    %64 = vector.broadcast %cst_26 : f32 to vector<1x4xf32>
    %c0_i32 = arith.constant 0 : i32
    %65 = vector.broadcast %c0_i32 : i32 to vector<1x4xi32>
    %66 = arith.cmpi eq, %63, %65 : vector<1x4xi32>
    %67 = vector.extract_strided_slice %53 {offsets = [0, 0], sizes = [1, 1], strides = [1, 1]} : vector<1x128xf32> to vector<1x1xf32>
    %cst_27 = arith.constant 0.000000e+00 : f32
    %68 = vector.shape_cast %67 : vector<1x1xf32> to vector<1x1xf32>
    %69 = vector.broadcast %68 : vector<1x1xf32> to vector<1x4xf32>
    %70 = vector.broadcast %cst_27 : f32 to vector<1x4xf32>
    %71 = arith.select %66, %69, %70 : vector<1x4xi1>, vector<1x4xf32>
    %72 = arith.addf %64, %71 : vector<1x4xf32>
    %c1_i32 = arith.constant 1 : i32
    %73 = vector.broadcast %c1_i32 : i32 to vector<1x4xi32>
    %74 = arith.cmpi eq, %63, %73 : vector<1x4xi32>
    %75 = vector.extract_strided_slice %53 {offsets = [0, 1], sizes = [1, 1], strides = [1, 1]} : vector<1x128xf32> to vector<1x1xf32>
    %cst_28 = arith.constant 0.000000e+00 : f32
    %76 = vector.shape_cast %75 : vector<1x1xf32> to vector<1x1xf32>
    %77 = vector.broadcast %76 : vector<1x1xf32> to vector<1x4xf32>
    %78 = vector.broadcast %cst_28 : f32 to vector<1x4xf32>
    %79 = arith.select %74, %77, %78 : vector<1x4xi1>, vector<1x4xf32>
    %80 = arith.addf %72, %79 : vector<1x4xf32>
    %c2_i32_29 = arith.constant 2 : i32
    %81 = vector.broadcast %c2_i32_29 : i32 to vector<1x4xi32>
    %82 = arith.cmpi eq, %63, %81 : vector<1x4xi32>
    %83 = vector.extract_strided_slice %53 {offsets = [0, 2], sizes = [1, 1], strides = [1, 1]} : vector<1x128xf32> to vector<1x1xf32>
    %cst_30 = arith.constant 0.000000e+00 : f32
    %84 = vector.shape_cast %83 : vector<1x1xf32> to vector<1x1xf32>
    %85 = vector.broadcast %84 : vector<1x1xf32> to vector<1x4xf32>
    %86 = vector.broadcast %cst_30 : f32 to vector<1x4xf32>
    %87 = arith.select %82, %85, %86 : vector<1x4xi1>, vector<1x4xf32>
    %88 = arith.addf %80, %87 : vector<1x4xf32>
    %c3_i32 = arith.constant 3 : i32
    %89 = vector.broadcast %c3_i32 : i32 to vector<1x4xi32>
    %90 = arith.cmpi eq, %63, %89 : vector<1x4xi32>
    %91 = vector.extract_strided_slice %53 {offsets = [0, 3], sizes = [1, 1], strides = [1, 1]} : vector<1x128xf32> to vector<1x1xf32>
    %cst_31 = arith.constant 0.000000e+00 : f32
    %92 = vector.shape_cast %91 : vector<1x1xf32> to vector<1x1xf32>
    %93 = vector.broadcast %92 : vector<1x1xf32> to vector<1x4xf32>
    %94 = vector.broadcast %cst_31 : f32 to vector<1x4xf32>
    %95 = arith.select %90, %93, %94 : vector<1x4xi1>, vector<1x4xf32>
    %96 = arith.addf %88, %95 : vector<1x4xf32>
    %cst_32 = arith.constant 0.000000e+00 : f32
    %97 = vector.broadcast %cst_32 : f32 to vector<8x128xf32>
    %c0_33 = arith.constant 0 : index
    %c0_34 = arith.constant 0 : index
    %98 = vector.load %arg3[%c0_33, %c0_34] : memref<8x128xf32, #tpu.memory_space<vmem>>, vector<8x128xf32>
    tpu.vector_store %arg3[%c0_33, %c0_34], %97 {strides = array<i32>} : memref<8x128xf32, #tpu.memory_space<vmem>>, vector<8x128xf32>,
    %c0_35 = arith.constant 0 : index
    %c0_36 = arith.constant 0 : index
    %99 = vector.load %arg3[%c0_35, %c0_36] : memref<8x128xf32, #tpu.memory_space<vmem>>, vector<1x4xf32>
    tpu.vector_store %arg3[%c0_35, %c0_36], %96 {strides = array<i32>} : memref<8x128xf32, #tpu.memory_space<vmem>>, vector<1x4xf32>,
    return
  }
}

</mosaic_0001>

<llo_original>
// kernel: attention_critic_forward.1
$region0: #{attention_critic_forward.1}
  #allocation0 [shape = 'u32[]', space=smem, size = 0x4, offset = 0x4, fixed_abs, tag = 'smem constant byte address 0x4 - core index']
  #allocation1 [shape = 'u32[144,128]{1,0:T(1,128)}', space=vmem, size = 0x12000, scoped, tag = 'internal scratch']
  %s0 = inlined_call_operand.vmem [shape: f32[8,26], index: 0, kind: input, shape index: {}]
  %s1 = inlined_call_operand.vmem [shape: f32[2,4], index: 1, kind: input, shape index: {}]
  %s2 = inlined_call_operand.hbm [shape: f32[288,128], index: 2, kind: input, shape index: {}]
  %s3 = inlined_call_operand.vmem [shape: f32[8,128], index: 3, kind: output, shape index: {}]
  %s4 = sld [smem:[#allocation0]]
  $region26: #{attention_critic_forward.1} parent=0
    _
  %s6 = ssub.s32 1, %s4
  %s7 = scalar_select 0, %s6, %s4
  $region1: #{attention_critic_forward.1} parent=0
    #allocation2 [shape = 'u8[147456]{0}', space=vmem, size = 0x24000, scoped, tag = 'input window, operand 2, single buffered']
    #allocation3 [shape = 's32[1]{0}', space=sflag, size = 0x4, scoped, tag = 'scoped memory for attention_critic_forward.1']
    %8 = vsyncpa [#allocation3], 0
    // Predicated region
    $region2: #{attention_critic_forward.1} parent=1 // pred_check
      _
    $region3: #{attention_critic_forward.1} parent=1 // pred_check_branch
      %10 = sbr.rel (0) target = $region5
    $region4: #{attention_critic_forward.1} parent=1 // pred_region
      _
    $region5: #{attention_critic_forward.1} parent=1 // pred_fallthru
      _
    // Predicated region
    $region6: #{attention_critic_forward.1} parent=1 // pred_check
      _
    $region7: #{attention_critic_forward.1} parent=1 // pred_check_branch
      %12 = sbr.rel (0) target = $region9
    $region8: #{attention_critic_forward.1} parent=1 // pred_region
      _
    $region9: #{attention_critic_forward.1} parent=1 // pred_fallthru
      _
    // Predicated region
    $region10: #{attention_critic_forward.1} parent=1 // pred_check
      _
    $region11: #{attention_critic_forward.1} parent=1 // pred_check_branch
      %14 = sbr.rel (0) target = $region13
    $region12: #{attention_critic_forward.1} parent=1 // pred_region
      %s16 = ssub.s32 4608, 4608
      %17 = vsyncadd [#allocation3], %s16
      %s18 = sshll.u32 [#allocation2], 4
      %s19 = int_to_ptr.vmem [resolvable:$true] %s18
      %24 = dma.hbm_to_vmem [thread:$0]  %s2, 4608, %s19, [#allocation3], 128, 128, 8
    $region13: #{attention_critic_forward.1} parent=1 // pred_fallthru
      _
    // Predicated region
    $region14: #{attention_critic_forward.1} parent=1 // pred_check
      _
    $region15: #{attention_critic_forward.1} parent=1 // pred_check_branch
      %26 = sbr.rel (0) target = $region17
    $region16: #{attention_critic_forward.1} parent=1 // pred_region
      %27 = dma.done [#allocation3], 4608
    $region17: #{attention_critic_forward.1} parent=1 // pred_fallthru
      _
    %v28 = vld [vmem:[%s0] sm:$0xff]
    %v29 = vld [vmem:[#allocation2] sm:$0xff]
    %v30 = vld [vmem:[#allocation2 + $0x8] sm:$0xff]
    %v31 = vld [vmem:[#allocation2 + $0x10] sm:$0xff]
    %v32 = vld [vmem:[#allocation2 + $0x18] sm:$0x3]
    %v33 = vld [vmem:[#allocation2 + $0x20] sm:$0x1]
    %v34 = vlaneseq
    %v35 = vshrl.u32 %v34, 7
    %v36 = vsub.s32 0, %v35
    %v37 = vrot.slane %v33, %v36
    %vm38 = vcmask 211968
    %v40 = vsel %vm38, %v28, 0
    %vm42 = vcmask 1041408
    %v44 = vsel %vm42, %v32, 0
    %46 = vmatprep.subr.mxu0 0.0
    %47 = vmatpush1.msra.mxu0 0.0
    %48 = vmatprep.subr.mxu0 0.0
    %49 = vmatpush1.msra.mxu0 0.0
    %50 = vmatprep.subr.mxu0 0.0
    %51 = vmatpush1.msra.mxu0 0.0
    %52 = vmatprep.subr.mxu0 0.0
    %53 = vmatpush1.msra.mxu0 0.0
    %54 = vmatprep.subr.mxu0 0.0
    %55 = vmatpush1.msra.mxu0 0.0
    %56 = vmatprep.subr.mxu0 0.0
    %57 = vmatpush1.msra.mxu0 0.0
    %58 = vmatprep.subr.mxu0 0.0
    %59 = vmatpush1.msra.mxu0 0.0
    %60 = vmatprep.subr.mxu0 0.0
    %61 = vmatpush1.msra.mxu0 0.0
    %62 = vmatprep.subr.mxu0 0.0
    %63 = vmatpush1.msra.mxu0 0.0
    %64 = vmatprep.subr.mxu0 0.0
    %65 = vmatpush1.msra.mxu0 0.0
    %66 = vmatprep.subr.mxu0 0.0
    %67 = vmatpush1.msra.mxu0 0.0
    %68 = vmatprep.subr.mxu0 0.0
    %69 = vmatpush1.msra.mxu0 0.0
    %70 = vmatprep.subr.mxu0 0.0
    %71 = vmatpush1.msra.mxu0 %v44
    %72 = vmatprep.subr.mxu0 0.0
    %73 = vmatpush1.msra.mxu0 %v31
    %74 = vmatprep.subr.mxu0 0.0
    %75 = vmatpush1.msra.mxu0 %v30
    %76 = vmatprep.subr.mxu0 0.0
    %77 = vmatpush1.msra.mxu0 %v29
    %78 = vmatprep.subr.mxu0 0.0
    %79 = vmatpush2.msra.mxu0 0.0
    %80 = vmatprep.subr.mxu0 0.0
    %81 = vmatpush2.msra.mxu0 0.0
    %82 = vmatprep.subr.mxu0 0.0
    %83 = vmatpush2.msra.mxu0 0.0
    %84 = vmatprep.subr.mxu0 0.0
    %85 = vmatpush2.msra.mxu0 0.0
    %86 = vmatprep.subr.mxu0 0.0
    %87 = vmatpush2.msra.mxu0 0.0
    %88 = vmatprep.subr.mxu0 0.0
    %89 = vmatpush2.msra.mxu0 0.0
    %90 = vmatprep.subr.mxu0 0.0
    %91 = vmatpush2.msra.mxu0 0.0
    %92 = vmatprep.subr.mxu0 0.0
    %93 = vmatpush2.msra.mxu0 0.0
    %94 = vmatprep.subr.mxu0 0.0
    %95 = vmatpush2.msra.mxu0 0.0
    %96 = vmatprep.subr.mxu0 0.0
    %97 = vmatpush2.msra.mxu0 0.0
    %98 = vmatprep.subr.mxu0 0.0
    %99 = vmatpush2.msra.mxu0 0.0
    %100 = vmatprep.subr.mxu0 0.0
    %101 = vmatpush2.msra.mxu0 0.0
    %102 = vmatprep.subr.mxu0 0.0
    %103 = vmatpush2.msra.mxu0 0.0
    %104 = vmatprep.subr.mxu0 0.0
    %105 = vmatpush2.msra.mxu0 0.0
    %106 = vmatprep.subr.mxu0 0.0
    %107 = vmatpush2.msra.mxu0 0.0
    %108 = vmatprep.subr.mxu0 0.0
    %109 = vmatpush2.msra.mxu0 0.0
    %110 = vmatprep.mubr.f32.mxu0 0.0
    %111 = vmatmul.mubr.f32.gmra.mxu0 %v40
    %v112 = vpop.f32.mrf.mxu0
    %v113 = vadd.f32 %v37, %v112
    %v114 = vpop.f32.mrf.mxu0
    %115 = vdwg.mxu0
    %vm116 = vcmp.ge.f32.partialorder %v113, 0.0
    %v117 = vmul.f32 %v113, 0.01
    %v118 = vsel %vm116, %v113, %v117
    %v119 = vld [vmem:[#allocation2 + $0x28] sm:$0xff]
    %v120 = vld [vmem:[#allocation2 + $0x30] sm:$0xff]
    %v121 = vld [vmem:[#allocation2 + $0x38] sm:$0xff]
    %v122 = vld [vmem:[#allocation2 + $0x40] sm:$0xff]
    %v123 = vld [vmem:[#allocation2 + $0x48] sm:$0xff]
    %v124 = vld [vmem:[#allocation2 + $0x50] sm:$0xff]
    %v125 = vld [vmem:[#allocation2 + $0x58] sm:$0xff]
    %v126 = vld [vmem:[#allocation2 + $0x60] sm:$0xff]
    %v127 = vld [vmem:[#allocation2 + $0x68] sm:$0xff]
    %v128 = vld [vmem:[#allocation2 + $0x70] sm:$0xff]
    %v129 = vld [vmem:[#allocation2 + $0x78] sm:$0xff]
    %v130 = vld [vmem:[#allocation2 + $0x80] sm:$0xff]
    %v131 = vld [vmem:[#allocation2 + $0x88] sm:$0xff]
    %v132 = vld [vmem:[#allocation2 + $0x90] sm:$0xff]
    %v133 = vld [vmem:[#allocation2 + $0x98] sm:$0xff]
    %v134 = vld [vmem:[#allocation2 + $0xa0] sm:$0xff]
    %v135 = vld [vmem:[#allocation2 + $0xa8] sm:$0x1]
    %v136 = vlaneseq
    %v137 = vshrl.u32 %v136, 7
    %v138 = vsub.s32 0, %v137
    %v139 = vrot.slane %v135, %v138
    %140 = vmatprep.subr.mxu0 0.0
    %141 = vmatpush1.msra.mxu0 %v134
    %142 = vmatprep.subr.mxu0 0.0
    %143 = vmatpush1.msra.mxu0 %v133
    %144 = vmatprep.subr.mxu0 0.0
    %145 = vmatpush1.msra.mxu0 %v132
    %146 = vmatprep.subr.mxu0 0.0
    %147 = vmatpush1.msra.mxu0 %v131
    %148 = vmatprep.subr.mxu0 0.0
    %149 = vmatpush1.msra.mxu0 %v130
    %150 = vmatprep.subr.mxu0 0.0
    %151 = vmatpush1.msra.mxu0 %v129
    %152 = vmatprep.subr.mxu0 0.0
    %153 = vmatpush1.msra.mxu0 %v128
    %154 = vmatprep.subr.mxu0 0.0
    %155 = vmatpush1.msra.mxu0 %v127
    %156 = vmatprep.subr.mxu0 0.0
    %157 = vmatpush1.msra.mxu0 %v126
    %158 = vmatprep.subr.mxu0 0.0
    %159 = vmatpush1.msra.mxu0 %v125
    %160 = vmatprep.subr.mxu0 0.0
    %161 = vmatpush1.msra.mxu0 %v124
    %162 = vmatprep.subr.mxu0 0.0
    %163 = vmatpush1.msra.mxu0 %v123
    %164 = vmatprep.subr.mxu0 0.0
    %165 = vmatpush1.msra.mxu0 %v122
    %166 = vmatprep.subr.mxu0 0.0
    %167 = vmatpush1.msra.mxu0 %v121
    %168 = vmatprep.subr.mxu0 0.0
    %169 = vmatpush1.msra.mxu0 %v120
    %170 = vmatprep.subr.mxu0 0.0
    %171 = vmatpush1.msra.mxu0 %v119
    %172 = vmatprep.subr.mxu0 0.0
    %173 = vmatpush2.msra.mxu0 0.0
    %174 = vmatprep.subr.mxu0 0.0
    %175 = vmatpush2.msra.mxu0 0.0
    %176 = vmatprep.subr.mxu0 0.0
    %177 = vmatpush2.msra.mxu0 0.0
    %178 = vmatprep.subr.mxu0 0.0
    %179 = vmatpush2.msra.mxu0 0.0
    %180 = vmatprep.subr.mxu0 0.0
    %181 = vmatpush2.msra.mxu0 0.0
    %182 = vmatprep.subr.mxu0 0.0
    %183 = vmatpush2.msra.mxu0 0.0
    %184 = vmatprep.subr.mxu0 0.0
    %185 = vmatpush2.msra.mxu0 0.0
    %186 = vmatprep.subr.mxu0 0.0
    %187 = vmatpush2.msra.mxu0 0.0
    %188 = vmatprep.subr.mxu0 0.0
    %189 = vmatpush2.msra.mxu0 0.0
    %190 = vmatprep.subr.mxu0 0.0
    %191 = vmatpush2.msra.mxu0 0.0
    %192 = vmatprep.subr.mxu0 0.0
    %193 = vmatpush2.msra.mxu0 0.0
    %194 = vmatprep.subr.mxu0 0.0
    %195 = vmatpush2.msra.mxu0 0.0
    %196 = vmatprep.subr.mxu0 0.0
    %197 = vmatpush2.msra.mxu0 0.0
    %198 = vmatprep.subr.mxu0 0.0
    %199 = vmatpush2.msra.mxu0 0.0
    %200 = vmatprep.subr.mxu0 0.0
    %201 = vmatpush2.msra.mxu0 0.0
    %202 = vmatprep.subr.mxu0 0.0
    %203 = vmatpush2.msra.mxu0 0.0
    %204 = vmatprep.mubr.f32.mxu0 0.0
    %205 = vmatmul.mubr.f32.gmra.mxu0 %v118
    %v206 = vpop.f32.mrf.mxu0
    %v207 = vadd.f32 %v139, %v206
    %v208 = vpop.f32.mrf.mxu0
    %209 = vdwg.mxu0
    %vm210 = vcmp.ge.f32.partialorder %v207, 0.0
    %v211 = vmul.f32 %v207, 0.01
    %v212 = vsel %vm210, %v207, %v211
    %v214 = vrot.slane %v207, 1
    %215 = vrot.lane.b32.xlu0 %v214, 32
    %v216 = vpop.permute.xlu0 %215
    %v218 = vmul.f32 %v207, %v216
    %v219 = vmul.f32 %v218, 0.17677669
    %vm220 = vcmask 516352
    %v221 = vsel %vm220, %v219, -inf
    %222 = vmax.xlane.f32.xlu0 %v221
    %v223 = vpop.xlane.xlu0 %222
    %v224 = vsub.f32 %v219, %v223
    %v225 = vmul.f32 %v224, 1.442695
    %v226 = vpow.pop %v225
    %228 = vrot.lane.b32.xlu0 %v226, 96
    %v229 = vpop.permute.xlu0 %228
    %vm231 = vcmask 253952
    %v232 = vsel %vm231, %v229, 0.0
    %233 = vadd.xlane.f32.xlu0 %v232
    %v234 = vpop.xlane.xlu0 %233
    %v235 = vrcp.pop %v234
    %v236 = vmul.f32 %v226, %v235
    %v238 = vrot.slane %v236, 7
    %239 = vrot.lane.b32.xlu0 %v238, 32
    %v240 = vpop.permute.xlu0 %239
    %v242 = vmul.f32 %v212, %v240
    %244 = vrot.lane.b32.xlu0 %v118, 96
    %v245 = vpop.permute.xlu0 %244
    %v248 = vrot.slane %v242, 1
    %249 = vrot.lane.b32.xlu0 %v248, 96
    %v250 = vpop.permute.xlu0 %249
    %vm252 = vcmask 261120
    %v253 = vsel %vm252, %v245, %v250
    %v254 = vld [vmem:[#allocation2 + $0xb0] sm:$0xff]
    %v255 = vld [vmem:[#allocation2 + $0xb8] sm:$0xff]
    %v256 = vld [vmem:[#allocation2 + $0xc0] sm:$0xff]
    %v257 = vld [vmem:[#allocation2 + $0xc8] sm:$0xff]
    %v258 = vld [vmem:[#allocation2 + $0xd0] sm:$0xff]
    %v259 = vld [vmem:[#allocation2 + $0xd8] sm:$0xff]
    %v260 = vld [vmem:[#allocation2 + $0xe0] sm:$0xff]
    %v261 = vld [vmem:[#allocation2 + $0xe8] sm:$0xff]
    %v262 = vld [vmem:[#allocation2 + $0xf0] sm:$0x1]
    %vm263 = vcmask 523264
    %v265 = vsel %vm263, %v253, 0
    %267 = vmatprep.subr.mxu0 0.0
    %268 = vmatpush1.msra.mxu0 0.0
    %269 = vmatprep.subr.mxu0 0.0
    %270 = vmatpush1.msra.mxu0 0.0
    %271 = vmatprep.subr.mxu0 0.0
    %272 = vmatpush1.msra.mxu0 0.0
    %273 = vmatprep.subr.mxu0 0.0
    %274 = vmatpush1.msra.mxu0 0.0
    %275 = vmatprep.subr.mxu0 0.0
    %276 = vmatpush1.msra.mxu0 0.0
    %277 = vmatprep.subr.mxu0 0.0
    %278 = vmatpush1.msra.mxu0 0.0
    %279 = vmatprep.subr.mxu0 0.0
    %280 = vmatpush1.msra.mxu0 0.0
    %281 = vmatprep.subr.mxu0 0.0
    %282 = vmatpush1.msra.mxu0 0.0
    %283 = vmatprep.subr.mxu0 0.0
    %284 = vmatpush1.msra.mxu0 %v261
    %285 = vmatprep.subr.mxu0 0.0
    %286 = vmatpush1.msra.mxu0 %v260
    %287 = vmatprep.subr.mxu0 0.0
    %288 = vmatpush1.msra.mxu0 %v259
    %289 = vmatprep.subr.mxu0 0.0
    %290 = vmatpush1.msra.mxu0 %v258
    %291 = vmatprep.subr.mxu0 0.0
    %292 = vmatpush1.msra.mxu0 %v257
    %293 = vmatprep.subr.mxu0 0.0
    %294 = vmatpush1.msra.mxu0 %v256
    %295 = vmatprep.subr.mxu0 0.0
    %296 = vmatpush1.msra.mxu0 %v255
    %297 = vmatprep.subr.mxu0 0.0
    %298 = vmatpush1.msra.mxu0 %v254
    %299 = vmatprep.subr.mxu0 0.0
    %300 = vmatpush2.msra.mxu0 0.0
    %301 = vmatprep.subr.mxu0 0.0
    %302 = vmatpush2.msra.mxu0 0.0
    %303 = vmatprep.subr.mxu0 0.0
    %304 = vmatpush2.msra.mxu0 0.0
    %305 = vmatprep.subr.mxu0 0.0
    %306 = vmatpush2.msra.mxu0 0.0
    %307 = vmatprep.subr.mxu0 0.0
    %308 = vmatpush2.msra.mxu0 0.0
    %309 = vmatprep.subr.mxu0 0.0
    %310 = vmatpush2.msra.mxu0 0.0
    %311 = vmatprep.subr.mxu0 0.0
    %312 = vmatpush2.msra.mxu0 0.0
    %313 = vmatprep.subr.mxu0 0.0
    %314 = vmatpush2.msra.mxu0 0.0
    %315 = vmatprep.subr.mxu0 0.0
    %316 = vmatpush2.msra.mxu0 0.0
    %317 = vmatprep.subr.mxu0 0.0
    %318 = vmatpush2.msra.mxu0 0.0
    %319 = vmatprep.subr.mxu0 0.0
    %320 = vmatpush2.msra.mxu0 0.0
    %321 = vmatprep.subr.mxu0 0.0
    %322 = vmatpush2.msra.mxu0 0.0
    %323 = vmatprep.subr.mxu0 0.0
    %324 = vmatpush2.msra.mxu0 0.0
    %325 = vmatprep.subr.mxu0 0.0
    %326 = vmatpush2.msra.mxu0 0.0
    %327 = vmatprep.subr.mxu0 0.0
    %328 = vmatpush2.msra.mxu0 0.0
    %329 = vmatprep.subr.mxu0 0.0
    %330 = vmatpush2.msra.mxu0 0.0
    %331 = vmatprep.mubr.f32.mxu0 0.0
    %332 = vmatmul.mubr.f32.gmra.mxu0 %v265
    %v333 = vpop.f32.mrf.mxu0
    %v334 = vadd.f32 %v262, %v333
    %v335 = vpop.f32.mrf.mxu0
    %336 = vdwg.mxu0
    %vm337 = vcmp.ge.f32.partialorder %v334, 0.0
    %v338 = vmul.f32 %v334, 0.01
    %v339 = vsel %vm337, %v334, %v338
    %v340 = vld [vmem:[#allocation2 + $0xf8] sm:$0xff]
    %v341 = vld [vmem:[#allocation2 + $0x100] sm:$0xff]
    %v342 = vld [vmem:[#allocation2 + $0x108] sm:$0xff]
    %v343 = vld [vmem:[#allocation2 + $0x110] sm:$0xff]
    %v344 = vld [vmem:[#allocation2 + $0x118] sm:$0x1]
    %v346 = vsel %vm252, %v339, 0
    %348 = vmatprep.subr.mxu0 0.0
    %349 = vmatpush1.msra.mxu0 0.0
    %350 = vmatprep.subr.mxu0 0.0
    %351 = vmatpush1.msra.mxu0 0.0
    %352 = vmatprep.subr.mxu0 0.0
    %353 = vmatpush1.msra.mxu0 0.0
    %354 = vmatprep.subr.mxu0 0.0
    %355 = vmatpush1.msra.mxu0 0.0
    %356 = vmatprep.subr.mxu0 0.0
    %357 = vmatpush1.msra.mxu0 0.0
    %358 = vmatprep.subr.mxu0 0.0
    %359 = vmatpush1.msra.mxu0 0.0
    %360 = vmatprep.subr.mxu0 0.0
    %361 = vmatpush1.msra.mxu0 0.0
    %362 = vmatprep.subr.mxu0 0.0
    %363 = vmatpush1.msra.mxu0 0.0
    %364 = vmatprep.subr.mxu0 0.0
    %365 = vmatpush1.msra.mxu0 0.0
    %366 = vmatprep.subr.mxu0 0.0
    %367 = vmatpush1.msra.mxu0 0.0
    %368 = vmatprep.subr.mxu0 0.0
    %369 = vmatpush1.msra.mxu0 0.0
    %370 = vmatprep.subr.mxu0 0.0
    %371 = vmatpush1.msra.mxu0 0.0
    %372 = vmatprep.subr.mxu0 0.0
    %373 = vmatpush1.msra.mxu0 %v343
    %374 = vmatprep.subr.mxu0 0.0
    %375 = vmatpush1.msra.mxu0 %v342
    %376 = vmatprep.subr.mxu0 0.0
    %377 = vmatpush1.msra.mxu0 %v341
    %378 = vmatprep.subr.mxu0 0.0
    %379 = vmatpush1.msra.mxu0 %v340
    %380 = vmatprep.subr.mxu0 0.0
    %381 = vmatpush2.msra.mxu0 0.0
    %382 = vmatprep.subr.mxu0 0.0
    %383 = vmatpush2.msra.mxu0 0.0
    %384 = vmatprep.subr.mxu0 0.0
    %385 = vmatpush2.msra.mxu0 0.0
    %386 = vmatprep.subr.mxu0 0.0
    %387 = vmatpush2.msra.mxu0 0.0
    %388 = vmatprep.subr.mxu0 0.0
    %389 = vmatpush2.msra.mxu0 0.0
    %390 = vmatprep.subr.mxu0 0.0
    %391 = vmatpush2.msra.mxu0 0.0
    %392 = vmatprep.subr.mxu0 0.0
    %393 = vmatpush2.msra.mxu0 0.0
    %394 = vmatprep.subr.mxu0 0.0
    %395 = vmatpush2.msra.mxu0 0.0
    %396 = vmatprep.subr.mxu0 0.0
    %397 = vmatpush2.msra.mxu0 0.0
    %398 = vmatprep.subr.mxu0 0.0
    %399 = vmatpush2.msra.mxu0 0.0
    %400 = vmatprep.subr.mxu0 0.0
    %401 = vmatpush2.msra.mxu0 0.0
    %402 = vmatprep.subr.mxu0 0.0
    %403 = vmatpush2.msra.mxu0 0.0
    %404 = vmatprep.subr.mxu0 0.0
    %405 = vmatpush2.msra.mxu0 0.0
    %406 = vmatprep.subr.mxu0 0.0
    %407 = vmatpush2.msra.mxu0 0.0
    %408 = vmatprep.subr.mxu0 0.0
    %409 = vmatpush2.msra.mxu0 0.0
    %410 = vmatprep.subr.mxu0 0.0
    %411 = vmatpush2.msra.mxu0 0.0
    %412 = vmatprep.mubr.f32.mxu0 0.0
    %413 = vmatmul.mubr.f32.gmra.mxu0 %v346
    %v414 = vpop.f32.mrf.mxu0
    %v415 = vadd.f32 %v344, %v414
    %v416 = vpop.f32.mrf.mxu0
    %417 = vdwg.mxu0
    %v418 = vld [vmem:[%s1] sm:$0x3]
    %v419 = vlaneseq
    %v420 = vshrl.u32 %v419, 7
    %vm421 = vcmask 25600
    %v422 = vsel %vm421, %v418, -inf
    %v423 = vrot.slane %v422, 4
    %v424 = vmax.f32 %v422, %v423
    %v425 = vrot.slane %v424, 2
    %v426 = vmax.f32 %v424, %v425
    %v427 = vrot.slane %v426, 1
    %v428 = vmax.f32 %v426, %v427
    %vm429 = vcmp.eq.f32.partialorder %v418, %v428
    %v430 = vsel %vm429, %v420, 2
    %v431 = vsel %vm421, %v430, 2147483647
    %v432 = vrot.slane %v431, 4
    %vm433 = vcmp.lt.s32.totalorder %v431, %v432
    %v434 = vsel %vm433, %v431, %v432
    %v435 = vrot.slane %v434, 2
    %vm436 = vcmp.lt.s32.totalorder %v434, %v435
    %v437 = vsel %vm436, %v434, %v435
    %v438 = vrot.slane %v437, 1
    %vm439 = vcmp.lt.s32.totalorder %v437, %v438
    %v440 = vsel %vm439, %v437, %v438
    %vm441 = vcmp.eq.s32.totalorder %v440, 0
    %443 = vset.pattern.permute.xlu0 0
    %444 = vperm.xlu0 %443, %v415
    %v445 = vpop.permute.xlu0 %444
    %v447 = vsel %vm441, %v445, 0.0
    %v448 = vadd.f32 %v447, 0.0
    %vm449 = vcmp.eq.s32.totalorder %v440, 1
    %450 = vset.pattern.permute.xlu0 1
    %451 = vperm.xlu0 %450, %v415
    %v452 = vpop.permute.xlu0 %451
    %v454 = vsel %vm449, %v452, 0.0
    %v455 = vadd.f32 %v448, %v454
    %vm456 = vcmp.eq.s32.totalorder %v440, 2
    %457 = vset.pattern.permute.xlu0 2
    %458 = vperm.xlu0 %457, %v415
    %v459 = vpop.permute.xlu0 %458
    %v461 = vsel %vm456, %v459, 0.0
    %v462 = vadd.f32 %v455, %v461
    %vm463 = vcmp.eq.s32.totalorder %v440, 3
    %464 = vset.pattern.permute.xlu0 3
    %465 = vperm.xlu0 %464, %v415
    %v466 = vpop.permute.xlu0 %465
    %v468 = vsel %vm463, %v466, 0.0
    %v469 = vadd.f32 %v462, %v468
    %470 = vst [vmem:[%s3] sm:$0xff] 0.0
    %vm471 = vcmask 24576
    %472 = vst.msk [vmem:[%s3] sm:$0x1] %vm471, %v469
    // Predicated region
    $region18: #{attention_critic_forward.1} parent=1 // pred_check
      _
    $region19: #{attention_critic_forward.1} parent=1 // pred_check_branch
      %474 = sbr.rel (0) target = $region21
    $region20: #{attention_critic_forward.1} parent=1 // pred_region
      _
    $region21: #{attention_critic_forward.1} parent=1 // pred_fallthru
      _
    // Predicated region
    $region22: #{attention_critic_forward.1} parent=1 // pred_check
      _
    $region23: #{attention_critic_forward.1} parent=1 // pred_check_branch
      %476 = sbr.rel (0) target = $region25
    $region24: #{attention_critic_forward.1} parent=1 // pred_region
      _
    $region25: #{attention_critic_forward.1} parent=1 // pred_fallthru
      _
    %477 = vsyncpa [#allocation3], 1

</llo_original>
